<compile_context>
chip_gen: v7x
topology: tpu7x:2x2x1
jax: 0.10.0
libtpu: 0.0.40
codegen_flags: <defaults>
</compile_context>

<pallas_src>
import jax
import jax.numpy as jnp
from jax.experimental import pallas as pl
from jax.experimental.pallas import tpu as pltpu


def _copy_kernel(x_ref, o_ref):
    # Lane-dense identity copy: one unmasked full-block load + store per grid step.
    o_ref[...] = x_ref[...]


def _pick_copy_shape(total_elems, fallback_cols):
    """Pick a 2D factorization with a wide lane axis (large multiple of 128).

    Legal because the op is a pure contiguous row-major copy, so any
    factorization of the flat buffer is equivalent.
    """
    for lane in (4096, 2048, 1024, 512, 256, 128):
        if total_elems % lane == 0:
            return total_elems // lane, lane
    # fallback_cols = 2*w always divides total (= n * c_out * 2w).
    return total_elems // fallback_cols, fallback_cols


def pixel_shuffle(x, upscale_factor=2):
    """Matches the PyTorch forward exactly: (n, c, w) -> view(n, c // 2, 2 * w).

    `upscale_factor` is accepted for API parity but, like the PyTorch forward,
    the factor 2 is hard-coded (the reference ignores the attribute).
    """
    del upscale_factor  # the reference forward ignores it
    n, c, w = x.shape
    assert c % 2 == 0, "channel dim must be even"
    c_out, w_new = c // 2, 2 * w
    total = n * c * w
    itemsize = x.dtype.itemsize

    # Free metadata reshape to a lane-dense 2D slab for the copy.
    rows, cols = _pick_copy_shape(total, w_new)
    x2 = x.reshape(rows, cols)

    # ~2 MiB blocks: big enough to amortize the ~0.35us/step cost and reach the
    # high-fraction-of-roofline DMA regime, small enough that 2x(in+out)
    # double-buffers (~8 MiB) fit v5e's 16 MiB / v7x's 32 MiB scoped VMEM.
    target_block_bytes = 2 << 20
    row_bytes = cols * itemsize
    br = max(1, target_block_bytes // row_bytes)
    if br >= rows:
        br = rows                      # single full-extent block (tiny problems)
    else:
        br = max(8, (br // 8) * 8)     # keep the sublane dim a multiple of 8
    grid = (pl.cdiv(rows, br),)        # Pallas clips the ragged tail block

    out2 = pl.pallas_call(
        _copy_kernel,
        out_shape=jax.ShapeDtypeStruct((rows, cols), x.dtype),
        grid=grid,
        in_specs=[pl.BlockSpec((br, cols), lambda i: (i, 0))],
        out_specs=pl.BlockSpec((br, cols), lambda i: (i, 0)),
        compiler_params=pltpu.CompilerParams(
            dimension_semantics=("parallel",),
            vmem_limit_bytes=32 << 20,
        ),
        cost_estimate=pl.CostEstimate(
            flops=0,
            transcendentals=0,
            bytes_accessed=2 * total * itemsize,
        ),
    )(x2)

    # Free metadata reshape back to the module's 3D output.
    return out2.reshape(n, c_out, w_new)


if __name__ == "__main__":
    key = jax.random.PRNGKey(0)

    # Small 3D input consistent with the module: (batch, channels, width).
    n, c, w = 2, 8, 64
    x = jax.random.normal(key, (n, c, w), dtype=jnp.float32)

    out = jax.jit(pixel_shuffle)(x)
    out = jax.block_until_ready(out)

    # Reference: PyTorch's .view(n, c//2, 2*w) on a contiguous tensor == row-major reshape.
    ref = x.reshape(n, c // 2, 2 * w)
    assert out.shape == (n, c // 2, 2 * w), out.shape
    assert jnp.array_equal(out, ref), float(jnp.max(jnp.abs(out - ref)))

    print("KERNEL_OK")
</pallas_src>

<mosaic_0001>
module attributes {stable_mosaic.version = 11 : i64} {
  func.func @_copy_kernel(%arg0: i32, %arg1: memref<1x1024xf32, #tpu.memory_space<vmem>>, %arg2: memref<1x1024xf32, #tpu.memory_space<vmem>>) attributes {dimension_semantics = [#tpu.dimension_semantics<parallel>], iteration_bounds = array<i64: 1>, scalar_prefetch = 0 : i64, scratch_operands = 0 : i64, tpu.core_type = #tpu.core_type<tc>, window_params = [{transform_indices = @transform_0, window_bounds = array<i64: 1, 1024>}, {transform_indices = @transform_1, window_bounds = array<i64: 1, 1024>}]} {
    %c0 = arith.constant 0 : index
    %c0_0 = arith.constant 0 : index
    %0 = vector.load %arg1[%c0, %c0_0] : memref<1x1024xf32, #tpu.memory_space<vmem>>, vector<1x1024xf32>
    %c0_1 = arith.constant 0 : index
    %c0_2 = arith.constant 0 : index
    %1 = vector.load %arg2[%c0_1, %c0_2] : memref<1x1024xf32, #tpu.memory_space<vmem>>, vector<1x1024xf32>
    tpu.vector_store %arg2[%c0_1, %c0_2], %0 {strides = array<i32>} : memref<1x1024xf32, #tpu.memory_space<vmem>>, vector<1x1024xf32>,
    return
  }
  func.func @transform_0(%arg0: i32) -> (i32, i32) {
    %c0_i32 = arith.constant 0 : i32
    %c0_i32_0 = arith.constant 0 : i32
    return %arg0, %c0_i32 : i32, i32
  }
  func.func @transform_1(%arg0: i32) -> (i32, i32) {
    %c0_i32 = arith.constant 0 : i32
    %c0_i32_0 = arith.constant 0 : i32
    return %arg0, %c0_i32 : i32, i32
  }
}

</mosaic_0001>

<llo_original>
// kernel: pixel_shuffle.1
$region0: #{pixel_shuffle.1}
  #allocation0 [shape = 'u32[]', space=smem, size = 0x4, offset = 0x4, fixed_abs, tag = 'smem constant byte address 0x4 - core index']
  #allocation1 [shape = 'u32[144,128]{1,0:T(1,128)}', space=vmem, size = 0x12000, scoped, tag = 'internal scratch']
  %s0 = inlined_call_operand.vmem [shape: f32[1,1024], index: 0, kind: input, shape index: {}]
  %s1 = inlined_call_operand.hbm [shape: f32[1,1024], index: 1, kind: output, shape index: {}]
  %s2 = sld [smem:[#allocation0]]
  $region14: #{pixel_shuffle.1} parent=0
    _
  %s4 = ssub.s32 1, %s2
  %s5 = scalar_select 0, %s4, %s2
  $region1: #{pixel_shuffle.1} parent=0
    #allocation2 [shape = 'u8[4096]{0}', space=vmem, size = 0x1000, scoped, tag = 'output window, operand 0, single buffered']
    #allocation3 [shape = 's32[1]{0}', space=sflag, size = 0x4, scoped, tag = 'scoped memory for pixel_shuffle.1']
    %6 = vsyncpa [#allocation3], 0
    // Predicated region
    $region2: #{pixel_shuffle.1} parent=1 // pred_check
      _
    $region3: #{pixel_shuffle.1} parent=1 // pred_check_branch
      %8 = sbr.rel (0) target = $region5
    $region4: #{pixel_shuffle.1} parent=1 // pred_region
      _
    $region5: #{pixel_shuffle.1} parent=1 // pred_fallthru
      _
    %v9 = vld [vmem:[%s0] sm:$0xff]
    %10 = vst [vmem:[#allocation2] sm:$0xff] %v9
    // Predicated region
    $region6: #{pixel_shuffle.1} parent=1 // pred_check
      _
    $region7: #{pixel_shuffle.1} parent=1 // pred_check_branch
      %12 = sbr.rel (0) target = $region9
    $region8: #{pixel_shuffle.1} parent=1 // pred_region
      %s14 = ssub.s32 128, 128
      %15 = vsyncadd [#allocation3], %s14
      %s17 = sshll.u32 [#allocation2], 4
      %s18 = int_to_ptr.vmem [resolvable:$true] %s17
      %20 = dma.vmem_to_hbm [thread:$0]  %s18, 128, %s1, [#allocation3]
    $region9: #{pixel_shuffle.1} parent=1 // pred_fallthru
      _
    // Predicated region
    $region10: #{pixel_shuffle.1} parent=1 // pred_check
      _
    $region11: #{pixel_shuffle.1} parent=1 // pred_check_branch
      %22 = sbr.rel (0) target = $region13
    $region12: #{pixel_shuffle.1} parent=1 // pred_region
      %23 = dma.done [#allocation3], 128
    $region13: #{pixel_shuffle.1} parent=1 // pred_fallthru
      _
    %24 = vsyncpa [#allocation3], 1

</llo_original>
